<compile_context>
chip_gen: v6e
topology: v6e:2x2x1
jax: 0.10.0
libtpu: 0.0.40
codegen_flags: <defaults>
</compile_context>

<pallas_src>
import jax
import jax.numpy as jnp
from jax.experimental import pallas as pl
from jax.experimental.pallas import tpu as pltpu


def _round_up(x, m):
    return (x + m - 1) // m * m


def _vmem_limit_bytes():
    try:
        cap = pltpu.get_tpu_info().vmem_capacity_bytes
    except Exception:
        cap = 64 * 1024 * 1024  # conservative (v7x-sized) fallback
    return int(0.85 * cap)


def _pick_fc_tile(n_p, f_in_p, f_out_p, vmem_limit):
    budget = int(0.45 * vmem_limit)
    for tm in (512, 256, 128):
        if n_p % tm:
            continue
        need = (2 * tm * f_in_p * 4 + tm * f_in_p * 2          # feature f32 (2-buf) + bf16 temp
                + 2 * tm * f_out_p * 2 + tm * f_out_p * 4      # fw bf16 (2-buf) + f32 dot temp
                + f_in_p * f_out_p * (4 + 2) + f_out_p * 4)    # weight + bias
        if need <= budget:
            return tm
    return 128


def _pick_agg_tiles(n_p, f_out_p, vmem_limit):
    """Pick (TN, TK) for the aggregation kernel against the VMEM budget."""
    budget = int(0.45 * vmem_limit)
    best, best_area = (128, 128), 0
    for tn in (1024, 512, 256, 128):
        if n_p % tn:
            continue
        for tk in (2048, 1024, 512, 256, 128):
            if n_p % tk:
                continue
            need = (2 * tn * tk * 4 + tn * tk * 2               # A f32 (2-buf) + bf16 cast temp
                    + 2 * tk * f_out_p * 2                      # fw bf16 (2-buf)
                    + 2 * tn * f_out_p * 4                      # out f32 (2-buf)
                    + 2 * tn * f_out_p * 4)                     # acc scratch + dot temp
            if need <= budget and tn * tk > best_area:
                best, best_area = (tn, tk), tn * tk
    return best


def _fc_relu_kernel(feat_ref, w_ref, b_ref, fw_ref):
    # feat_ref: (TM, F_in_p) f32, w_ref: (F_in_p, F_out_p) f32, b_ref: (1, F_out_p) f32
    # fw_ref:   (TM, F_out_p) bf16  -> relu(feature @ W^T + bias)
    x = jnp.dot(feat_ref[...].astype(jnp.bfloat16),
                w_ref[...].astype(jnp.bfloat16),
                preferred_element_type=jnp.float32)
    fw_ref[...] = jnp.maximum(x + b_ref[...], 0.0).astype(fw_ref.dtype)


def _agg_kernel(a_ref, fw_ref, out_ref, acc_ref):
    # a_ref:   (TN, TK)       f32  -- adjacency tile, cast to bf16 in-kernel
    # fw_ref:  (TK, F_out_p)  bf16 -- relu(fc(feature)) tile
    # out_ref: (TN, F_out_p)  f32
    # acc_ref: (TN, F_out_p)  f32 scratch accumulator over the k axis
    kt = pl.program_id(2)

    @pl.when(kt == 0)
    def _():
        acc_ref[...] = jnp.zeros_like(acc_ref)

    acc_ref[...] += jnp.dot(a_ref[...].astype(jnp.bfloat16), fw_ref[...],
                            preferred_element_type=jnp.float32)

    @pl.when(kt == pl.num_programs(2) - 1)
    def _():
        out_ref[...] = acc_ref[...].astype(out_ref.dtype)


def graphconvolution_forward(feature, A, fc_weight, fc_bias):
    """feature: (B, N, F_in), A: (B, N, N), fc_weight: (F_out, F_in), fc_bias: (F_out,)."""
    B, N, F_in = feature.shape
    F_out = fc_weight.shape[0]

    # Lane-dense padding (last dims map to the 128-wide lane axis); N padded so the
    # tile ladder always has an exact divisor.
    N_p = _round_up(N, 128)
    F_in_p = _round_up(F_in, 128)
    F_out_p = _round_up(F_out, 128)

    vmem_limit = _vmem_limit_bytes()
    TM = _pick_fc_tile(N_p, F_in_p, F_out_p, vmem_limit)
    TN, TK = _pick_agg_tiles(N_p, F_out_p, vmem_limit)

    # Keep everything f32 on the HBM/DMA path; casts happen inside the kernels.
    feat_p = feature.astype(jnp.float32)
    if (N_p, F_in_p) != (N, F_in):
        feat_p = jnp.pad(feat_p, ((0, 0), (0, N_p - N), (0, F_in_p - F_in)))
    A_p = A.astype(jnp.float32)
    if N_p != N:
        A_p = jnp.pad(A_p, ((0, 0), (0, N_p - N), (0, N_p - N)))
    w_t = fc_weight.T.astype(jnp.float32)
    if (F_in_p, F_out_p) != (F_in, F_out):
        w_t = jnp.pad(w_t, ((0, F_in_p - F_in), (0, F_out_p - F_out)))
    bias_p = fc_bias.astype(jnp.float32)
    if F_out_p != F_out:
        bias_p = jnp.pad(bias_p, (0, F_out_p - F_out))
    bias_p = bias_p.reshape(1, F_out_p)

    # ---- Kernel 1: fw = relu(fc(feature)), written to HBM in bf16. ----
    fc_cost = pl.CostEstimate(
        flops=2 * B * N_p * F_in_p * F_out_p,
        transcendentals=0,
        bytes_accessed=int(B * N_p * F_in_p * 4 + F_in_p * F_out_p * 4
                           + F_out_p * 4 + B * N_p * F_out_p * 2),
    )
    fw = pl.pallas_call(
        _fc_relu_kernel,
        out_shape=jax.ShapeDtypeStruct((B, N_p, F_out_p), jnp.bfloat16),
        grid_spec=pltpu.PrefetchScalarGridSpec(
            num_scalar_prefetch=0,
            grid=(B, N_p // TM),
            in_specs=[
                pl.BlockSpec((None, TM, F_in_p), lambda b, m: (b, m, 0)),   # feature rows
                pl.BlockSpec((F_in_p, F_out_p), lambda b, m: (0, 0)),       # weight (transposed)
                pl.BlockSpec((1, F_out_p), lambda b, m: (0, 0)),            # bias
            ],
            out_specs=pl.BlockSpec((None, TM, F_out_p), lambda b, m: (b, m, 0)),
        ),
        compiler_params=pltpu.CompilerParams(
            dimension_semantics=("parallel", "parallel"),
            vmem_limit_bytes=vmem_limit,
        ),
        cost_estimate=fc_cost,
    )(feat_p, w_t, bias_p)

    # ---- Kernel 2: out = A @ fw, K-tiled over N with an f32 accumulator. ----
    agg_cost = pl.CostEstimate(
        flops=2 * B * N_p * N_p * F_out_p,
        transcendentals=0,
        bytes_accessed=int(B * N_p * N_p * 4
                           + B * (N_p // TN) * N_p * F_out_p * 2
                           + B * N_p * F_out_p * 4),
    )
    out_p = pl.pallas_call(
        _agg_kernel,
        out_shape=jax.ShapeDtypeStruct((B, N_p, F_out_p), jnp.float32),
        grid_spec=pltpu.PrefetchScalarGridSpec(
            num_scalar_prefetch=0,
            grid=(B, N_p // TN, N_p // TK),
            in_specs=[
                pl.BlockSpec((None, TN, TK), lambda b, rt, kt: (b, rt, kt)),        # A tile (f32)
                pl.BlockSpec((None, TK, F_out_p), lambda b, rt, kt: (b, kt, 0)),    # fw tile (bf16)
            ],
            out_specs=pl.BlockSpec((None, TN, F_out_p), lambda b, rt, kt: (b, rt, 0)),
            scratch_shapes=[pltpu.VMEM((TN, F_out_p), jnp.float32)],
        ),
        compiler_params=pltpu.CompilerParams(
            dimension_semantics=("parallel", "parallel", "arbitrary"),
            vmem_limit_bytes=vmem_limit,
        ),
        cost_estimate=agg_cost,
    )(A_p, fw)

    # Only pay the unpad pass when padding was actually applied.
    if N_p != N or F_out_p != F_out:
        return out_p[:, :N, :F_out]
    return out_p


if __name__ == "__main__":
    # Small deterministic example consistent with the module's forward.
    B, N, F_in, F_out = 2, 16, 32, 32

    key = jax.random.PRNGKey(0)
    k1, k2, k3, k4 = jax.random.split(key, 4)

    feature = jax.random.normal(k1, (B, N, F_in), dtype=jnp.float32)
    A = jax.random.normal(k2, (B, N, N), dtype=jnp.float32)

    # nn.Linear(input_features, output_features) parameter shapes.
    fc_weight = jax.random.normal(k3, (F_out, F_in), dtype=jnp.float32) * 0.1
    fc_bias = jax.random.normal(k4, (F_out,), dtype=jnp.float32) * 0.1
    # TODO(synk): the module's self.weight / self.bias Parameters are never used in
    # forward(), so they are intentionally omitted here.

    fwd = jax.jit(graphconvolution_forward)
    out = fwd(feature, A, fc_weight, fc_bias)
    jax.block_until_ready(out)

    # Reference check in plain JAX (f32); kernels use bf16 MXU inputs w/ f32 accumulation.
    ref = jnp.einsum(
        "bnm,bmf->bnf",
        A,
        jnp.maximum(jnp.einsum("bni,oi->bno", feature, fc_weight) + fc_bias, 0.0),
    )
    assert out.shape == (B, N, F_out)
    assert jnp.allclose(out, ref, atol=5e-2, rtol=5e-2), float(jnp.max(jnp.abs(out - ref)))

    print("KERNEL_OK")
</pallas_src>

<mosaic_0001>
module attributes {stable_mosaic.version = 11 : i64} {
  func.func @_fc_relu_kernel(%arg0: i32, %arg1: i32, %arg2: memref<1x128x128xf32, #tpu.memory_space<vmem>>, %arg3: memref<128x128xf32, #tpu.memory_space<vmem>>, %arg4: memref<1x128xf32, #tpu.memory_space<vmem>>, %arg5: memref<1x128x128xbf16, #tpu.memory_space<vmem>>) attributes {dimension_semantics = [#tpu.dimension_semantics<parallel>, #tpu.dimension_semantics<parallel>], iteration_bounds = array<i64: 2, 1>, scalar_prefetch = 0 : i64, scratch_operands = 0 : i64, tpu.core_type = #tpu.core_type<tc>, window_params = [{transform_indices = @transform_0, window_bounds = array<i64: 1, 128, 128>}, {pipeline_mode = #tpu.pipeline_mode<synchronous>, transform_indices = @transform_1, window_bounds = array<i64: 128, 128>}, {pipeline_mode = #tpu.pipeline_mode<synchronous>, transform_indices = @transform_2, window_bounds = array<i64: 1, 128>}, {transform_indices = @transform_3, window_bounds = array<i64: 1, 128, 128>}]} {
    %c0 = arith.constant 0 : index
    %c0_0 = arith.constant 0 : index
    %c0_1 = arith.constant 0 : index
    %0 = vector.load %arg2[%c0, %c0_0, %c0_1] : memref<1x128x128xf32, #tpu.memory_space<vmem>>, vector<1x128x128xf32>
    %1 = vector.shape_cast %0 : vector<1x128x128xf32> to vector<128x128xf32>
    %2 = arith.truncf %1 : vector<128x128xf32> to vector<128x128xbf16>
    %c0_2 = arith.constant 0 : index
    %c0_3 = arith.constant 0 : index
    %3 = vector.load %arg3[%c0_2, %c0_3] : memref<128x128xf32, #tpu.memory_space<vmem>>, vector<128x128xf32>
    %4 = arith.truncf %3 : vector<128x128xf32> to vector<128x128xbf16>
    %cst = arith.constant dense<0.000000e+00> : vector<128x128xf32>
    %5 = tpu.matmul %2, %4, %cst {dimension_numbers = #tpu.dot_dimension_numbers<[1], [0], [0], [1], [0, 0, 1, 1], [], []>} : vector<128x128xbf16>, vector<128x128xbf16>, vector<128x128xf32> -> vector<128x128xf32>
    %c0_4 = arith.constant 0 : index
    %c0_5 = arith.constant 0 : index
    %6 = vector.load %arg4[%c0_4, %c0_5] : memref<1x128xf32, #tpu.memory_space<vmem>>, vector<1x128xf32>
    %7 = vector.broadcast %6 : vector<1x128xf32> to vector<128x128xf32>
    %8 = arith.addf %5, %7 : vector<128x128xf32>
    %cst_6 = arith.constant 0.000000e+00 : f32
    %9 = vector.broadcast %cst_6 : f32 to vector<128x128xf32>
    %10 = arith.maximumf %8, %9 : vector<128x128xf32>
    %11 = arith.truncf %10 : vector<128x128xf32> to vector<128x128xbf16>
    %c0_7 = arith.constant 0 : index
    %c0_8 = arith.constant 0 : index
    %c0_9 = arith.constant 0 : index
    %12 = vector.load %arg5[%c0_7, %c0_8, %c0_9] : memref<1x128x128xbf16, #tpu.memory_space<vmem>>, vector<1x128x128xbf16>
    %13 = vector.shape_cast %12 : vector<1x128x128xbf16> to vector<128x128xbf16>
    %14 = vector.shape_cast %11 : vector<128x128xbf16> to vector<1x128x128xbf16>
    tpu.vector_store %arg5[%c0_7, %c0_8, %c0_9], %14 {strides = array<i32>} : memref<1x128x128xbf16, #tpu.memory_space<vmem>>, vector<1x128x128xbf16>,
    return
  }
  func.func @transform_0(%arg0: i32, %arg1: i32) -> (i32, i32, i32) {
    %c0_i32 = arith.constant 0 : i32
    %c0_i32_0 = arith.constant 0 : i32
    return %arg0, %arg1, %c0_i32 : i32, i32, i32
  }
  func.func @transform_1(%arg0: i32, %arg1: i32) -> (i32, i32) {
    %c0_i32 = arith.constant 0 : i32
    %c0_i32_0 = arith.constant 0 : i32
    %c0_i32_1 = arith.constant 0 : i32
    return %c0_i32, %c0_i32_0 : i32, i32
  }
  func.func @transform_2(%arg0: i32, %arg1: i32) -> (i32, i32) {
    %c0_i32 = arith.constant 0 : i32
    %c0_i32_0 = arith.constant 0 : i32
    %c0_i32_1 = arith.constant 0 : i32
    return %c0_i32, %c0_i32_0 : i32, i32
  }
  func.func @transform_3(%arg0: i32, %arg1: i32) -> (i32, i32, i32) {
    %c0_i32 = arith.constant 0 : i32
    %c0_i32_0 = arith.constant 0 : i32
    return %arg0, %arg1, %c0_i32 : i32, i32, i32
  }
}

module attributes {stable_mosaic.version = 11 : i64} {
  func.func @_agg_kernel(%arg0: i32, %arg1: i32, %arg2: i32, %arg3: memref<1x128x128xf32, #tpu.memory_space<vmem>>, %arg4: memref<1x128x128xbf16, #tpu.memory_space<vmem>>, %arg5: memref<1x128x128xf32, #tpu.memory_space<vmem>>, %arg6: memref<128x128xf32, #tpu.memory_space<vmem>>) attributes {dimension_semantics = [#tpu.dimension_semantics<parallel>, #tpu.dimension_semantics<parallel>, #tpu.dimension_semantics<arbitrary>], iteration_bounds = array<i64: 2, 1, 1>, scalar_prefetch = 0 : i64, scratch_operands = 1 : i64, tpu.core_type = #tpu.core_type<tc>, window_params = [{transform_indices = @transform_0, window_bounds = array<i64: 1, 128, 128>}, {transform_indices = @transform_1, window_bounds = array<i64: 1, 128, 128>}, {transform_indices = @transform_2, window_bounds = array<i64: 1, 128, 128>}]} {
    %c0_i32 = arith.constant 0 : i32
    %0 = arith.cmpi eq, %arg2, %c0_i32 : i32
    %1 = arith.extui %0 : i1 to i32
    %c0_i32_0 = arith.constant 0 : i32
    %2 = arith.cmpi ne, %1, %c0_i32_0 : i32
    scf.if %2 {
      %cst_12 = arith.constant 0.000000e+00 : f32
      %15 = vector.broadcast %cst_12 : f32 to vector<128x128xf32>
      %c0_13 = arith.constant 0 : index
      %c0_14 = arith.constant 0 : index
      %16 = vector.load %arg6[%c0_13, %c0_14] : memref<128x128xf32, #tpu.memory_space<vmem>>, vector<128x128xf32>
      tpu.vector_store %arg6[%c0_13, %c0_14], %15 {strides = array<i32>} : memref<128x128xf32, #tpu.memory_space<vmem>>, vector<128x128xf32>,
    } else {
    }
    %c0 = arith.constant 0 : index
    %c0_1 = arith.constant 0 : index
    %3 = vector.load %arg6[%c0, %c0_1] : memref<128x128xf32, #tpu.memory_space<vmem>>, vector<128x128xf32>
    %c0_2 = arith.constant 0 : index
    %c0_3 = arith.constant 0 : index
    %c0_4 = arith.constant 0 : index
    %4 = vector.load %arg3[%c0_2, %c0_3, %c0_4] : memref<1x128x128xf32, #tpu.memory_space<vmem>>, vector<1x128x128xf32>
    %5 = vector.shape_cast %4 : vector<1x128x128xf32> to vector<128x128xf32>
    %6 = arith.truncf %5 : vector<128x128xf32> to vector<128x128xbf16>
    %c0_5 = arith.constant 0 : index
    %c0_6 = arith.constant 0 : index
    %c0_7 = arith.constant 0 : index
    %7 = vector.load %arg4[%c0_5, %c0_6, %c0_7] : memref<1x128x128xbf16, #tpu.memory_space<vmem>>, vector<1x128x128xbf16>
    %8 = vector.shape_cast %7 : vector<1x128x128xbf16> to vector<128x128xbf16>
    %cst = arith.constant dense<0.000000e+00> : vector<128x128xf32>
    %9 = tpu.matmul %6, %8, %cst {dimension_numbers = #tpu.dot_dimension_numbers<[1], [0], [0], [1], [0, 0, 1, 1], [], []>} : vector<128x128xbf16>, vector<128x128xbf16>, vector<128x128xf32> -> vector<128x128xf32>
    %10 = arith.addf %3, %9 : vector<128x128xf32>
    %c0_8 = arith.constant 0 : index
    %c0_9 = arith.constant 0 : index
    %11 = vector.load %arg6[%c0_8, %c0_9] : memref<128x128xf32, #tpu.memory_space<vmem>>, vector<128x128xf32>
    tpu.vector_store %arg6[%c0_8, %c0_9], %10 {strides = array<i32>} : memref<128x128xf32, #tpu.memory_space<vmem>>, vector<128x128xf32>,
    %c0_i32_10 = arith.constant 0 : i32
    %12 = arith.cmpi eq, %arg2, %c0_i32_10 : i32
    %13 = arith.extui %12 : i1 to i32
    %c0_i32_11 = arith.constant 0 : i32
    %14 = arith.cmpi ne, %13, %c0_i32_11 : i32
    scf.if %14 {
      %c0_12 = arith.constant 0 : index
      %c0_13 = arith.constant 0 : index
      %15 = vector.load %arg6[%c0_12, %c0_13] : memref<128x128xf32, #tpu.memory_space<vmem>>, vector<128x128xf32>
      %c0_14 = arith.constant 0 : index
      %c0_15 = arith.constant 0 : index
      %c0_16 = arith.constant 0 : index
      %16 = vector.load %arg5[%c0_14, %c0_15, %c0_16] : memref<1x128x128xf32, #tpu.memory_space<vmem>>, vector<1x128x128xf32>
      %17 = vector.shape_cast %16 : vector<1x128x128xf32> to vector<128x128xf32>
      %18 = vector.shape_cast %15 : vector<128x128xf32> to vector<1x128x128xf32>
      tpu.vector_store %arg5[%c0_14, %c0_15, %c0_16], %18 {strides = array<i32>} : memref<1x128x128xf32, #tpu.memory_space<vmem>>, vector<1x128x128xf32>,
    } else {
    }
    return
  }
  func.func @transform_0(%arg0: i32, %arg1: i32, %arg2: i32) -> (i32, i32, i32) {
    %c0_i32 = arith.constant 0 : i32
    return %arg0, %arg1, %arg2 : i32, i32, i32
  }
  func.func @transform_1(%arg0: i32, %arg1: i32, %arg2: i32) -> (i32, i32, i32) {
    %c0_i32 = arith.constant 0 : i32
    %c0_i32_0 = arith.constant 0 : i32
    return %arg0, %arg2, %c0_i32 : i32, i32, i32
  }
  func.func @transform_2(%arg0: i32, %arg1: i32, %arg2: i32) -> (i32, i32, i32) {
    %c0_i32 = arith.constant 0 : i32
    %c0_i32_0 = arith.constant 0 : i32
    return %arg0, %arg1, %c0_i32 : i32, i32, i32
  }
}

</mosaic_0001>

<llo_original>
// kernel: graphconvolution_forward.2
$region0: #{graphconvolution_forward.2}
  #allocation0 [shape = 'u32[]', space=smem, size = 0x4, offset = 0x4, fixed_abs, tag = 'smem constant byte address 0x4 - core index']
  #allocation1 [shape = 'u32[144,128]{1,0:T(1,128)}', space=vmem, size = 0x12000, scoped, tag = 'internal scratch']
  %s0 = inlined_call_operand.vmem [shape: f32[2,128,128], index: 0, kind: input, shape index: {}]
  %s1 = inlined_call_operand.vmem [shape: f32[128,128], index: 1, kind: input, shape index: {}]
  %s2 = inlined_call_operand.vmem [shape: f32[1,128], index: 2, kind: input, shape index: {}]
  %s3 = inlined_call_operand.vmem [shape: bf16[2,128,128], index: 3, kind: output, shape index: {}]
  %s4 = sld [smem:[#allocation0]]
  $region45: #{graphconvolution_forward.2} parent=0
    _
  %s6 = ssub.s32 1, %s4
  %s7 = scalar_select 0, %s6, %s4
  loop: start=0, step=1, limit=4
  $region2: #{graphconvolution_forward.2} parent=0 // loop_pre_header
    _
  $region3: #{graphconvolution_forward.2} parent=0 // loop_header
    %s9 = sphi 0, %s13
    %p10 = scmp.ge.s32.totalorder %s9, 4
    %s16 = sphi 0, %s28
    %s17 = sphi 0, %s24
    %s18 = sphi 0, %s16
    %s19 = sphi 0, %s17
    %s20 = sphi 0, %s18
    %s21 = sphi 0, %s19
    %s33 = sphi 0, %s35
    %s36 = sphi 0, %s33
    %s37 = sphi 0, %s36
    %s53 = sphi 0, %s37
    %s57 = sphi 0, %s57
    %s59 = sphi 0, %s57
    %s60 = sphi 0, %s59
    %s74 = sphi 0, %s60
    %s78 = sphi 0, %s78
    %s80 = sphi 0, %s78
    %s81 = sphi 0, %s80
    %s95 = sphi 0, %s81
    %s103 = sphi 0, %s105
    %s106 = sphi 0, %s103
    %s107 = sphi 0, %s106
    %s123 = sphi 0, %s107
  $region4: #{graphconvolution_forward.2} parent=0 // loop_header_branch
    %12 = sbr.rel (%p10) target = $region8
  $region5: #{graphconvolution_forward.2} parent=0 // loop_body
    %s14 = ssub.s32 %s9, 1
    %s15 = ssub.s32 %s9, 2
    %s22 = sadd.s32 1, %s17
    %p23 = scmp.ge.s32.totalorder %s22, 1
    %s24 = scalar_select %p23, 0, %s22
    %s25 = sadd.s32 1, %s16
    %s26 = scalar_select %p23, %s25, %s16
    %p27 = scmp.ge.s32.totalorder %s26, 2
    %s28 = scalar_select %p27, 0, %s26
    %s29 = ssub.s32 %s16, %s28
    %s30 = ssub.s32 %s17, %s24
    %s31 = sor.u32 %s29, %s30
    %p32 = scmp.eq.s32.totalorder %s31, 0
    %s34 = sadd.s32 %s33, 1
    %s35 = scalar_select %p32, %s33, %s34
    %p38 = pneg %p32
    %p39 = scmp.eq.s32.totalorder %s9, 1
    %p40 = por %p38, %p39
    %p41 = scmp.ne.s32.totalorder %s33, %s36
    %p42 = scmp.eq.s32.totalorder %s9, 0
    %p43 = por %p41, %p42
    %p44 = scmp.ne.s32.totalorder %s33, %s36
    %p45 = scmp.eq.s32.totalorder %s14, 1
    %p46 = por %p44, %p45
    %p47 = scmp.ne.s32.totalorder %s36, %s37
    %p48 = scmp.eq.s32.totalorder %s14, 0
    %p49 = por %p47, %p48
    %p50 = scmp.ne.s32.totalorder %s36, %s37
    %p51 = scmp.eq.s32.totalorder %s15, 1
    %p52 = por %p50, %p51
    %p54 = scmp.ne.s32.totalorder %s37, %s53
    %p55 = scmp.eq.s32.totalorder %s15, 0
    %p56 = por %p54, %p55
    %s58 = sadd.s32 %s57, 1
    %p61 = scmp.eq.s32.totalorder %s9, 1
    %p62 = scmp.ne.s32.totalorder %s57, %s59
    %p63 = scmp.eq.s32.totalorder %s9, 0
    %p64 = por %p62, %p63
    %p65 = scmp.ne.s32.totalorder %s57, %s59
    %p66 = scmp.eq.s32.totalorder %s14, 1
    %p67 = por %p65, %p66
    %p68 = scmp.ne.s32.totalorder %s59, %s60
    %p69 = scmp.eq.s32.totalorder %s14, 0
    %p70 = por %p68, %p69
    %p71 = scmp.ne.s32.totalorder %s59, %s60
    %p72 = scmp.eq.s32.totalorder %s15, 1
    %p73 = por %p71, %p72
    %p75 = scmp.ne.s32.totalorder %s60, %s74
    %p76 = scmp.eq.s32.totalorder %s15, 0
    %p77 = por %p75, %p76
    %s79 = sadd.s32 %s78, 1
    %p82 = scmp.eq.s32.totalorder %s9, 1
    %p83 = scmp.ne.s32.totalorder %s78, %s80
    %p84 = scmp.eq.s32.totalorder %s9, 0
    %p85 = por %p83, %p84
    %p86 = scmp.ne.s32.totalorder %s78, %s80
    %p87 = scmp.eq.s32.totalorder %s14, 1
    %p88 = por %p86, %p87
    %p89 = scmp.ne.s32.totalorder %s80, %s81
    %p90 = scmp.eq.s32.totalorder %s14, 0
    %p91 = por %p89, %p90
    %p92 = scmp.ne.s32.totalorder %s80, %s81
    %p93 = scmp.eq.s32.totalorder %s15, 1
    %p94 = por %p92, %p93
    %p96 = scmp.ne.s32.totalorder %s81, %s95
    %p97 = scmp.eq.s32.totalorder %s15, 0
    %p98 = por %p96, %p97
    %s99 = ssub.s32 %s16, %s28
    %s100 = ssub.s32 %s17, %s24
    %s101 = sor.u32 %s99, %s100
    %p102 = scmp.eq.s32.totalorder %s101, 0
    %s104 = sadd.s32 %s103, 1
    %s105 = scalar_select %p102, %s103, %s104
    %p108 = pneg %p102
    %p109 = scmp.eq.s32.totalorder %s9, 1
    %p110 = por %p108, %p109
    %p111 = scmp.ne.s32.totalorder %s103, %s106
    %p112 = scmp.eq.s32.totalorder %s9, 0
    %p113 = por %p111, %p112
    %p114 = scmp.ne.s32.totalorder %s103, %s106
    %p115 = scmp.eq.s32.totalorder %s14, 1
    %p116 = por %p114, %p115
    %p117 = scmp.ne.s32.totalorder %s106, %s107
    %p118 = scmp.eq.s32.totalorder %s14, 0
    %p119 = por %p117, %p118
    %p120 = scmp.ne.s32.totalorder %s106, %s107
    %p121 = scmp.eq.s32.totalorder %s15, 1
    %p122 = por %p120, %p121
    %p124 = scmp.ne.s32.totalorder %s107, %s123
    %p125 = scmp.eq.s32.totalorder %s15, 0
    %p126 = por %p124, %p125
    %p127 = scmp.le.s32.totalorder 1, %s9
    %p128 = scmp.lt.s32.totalorder %s9, 3
    %p129 = pnand %p127, %p128
    %p130 = pneg %p129
    // Predicated region
    $region9: #{graphconvolution_forward.2} parent=5 // pred_check
      _
    $region10: #{graphconvolution_forward.2} parent=5 // pred_check_branch
      %132 = sbr.rel (%p129) target = $region12
    $region11: #{graphconvolution_forward.2} parent=5 // pred_region
      %s133 = ssub.s32 %s9, 1
      // Predicated region
      $region13: #{graphconvolution_forward.2} parent=11 // pred_check
        %p134 = pneg %p70
      $region14: #{graphconvolution_forward.2} parent=11 // pred_check_branch
        %136 = sbr.rel (%p134) target = $region16
      $region15: #{graphconvolution_forward.2} parent=11 // pred_region
        _
      $region16: #{graphconvolution_forward.2} parent=11 // pred_fallthru
        _
      // Predicated region
      $region17: #{graphconvolution_forward.2} parent=11 // pred_check
        %p137 = pneg %p91
      $region18: #{graphconvolution_forward.2} parent=11 // pred_check_branch
        %139 = sbr.rel (%p137) target = $region20
      $region19: #{graphconvolution_forward.2} parent=11 // pred_region
        _
      $region20: #{graphconvolution_forward.2} parent=11 // pred_fallthru
        _
    $region12: #{graphconvolution_forward.2} parent=5 // pred_fallthru
      _
    %p140 = scmp.lt.s32.totalorder %s9, 2
    // Predicated region
    $region21: #{graphconvolution_forward.2} parent=5 // pred_check
      %p141 = pneg %p140
    $region22: #{graphconvolution_forward.2} parent=5 // pred_check_branch
      %143 = sbr.rel (%p141) target = $region24
    $region23: #{graphconvolution_forward.2} parent=5 // pred_region
      // Predicated region
      $region25: #{graphconvolution_forward.2} parent=23 // pred_check
        %p144 = pneg %p43
      $region26: #{graphconvolution_forward.2} parent=23 // pred_check_branch
        %146 = sbr.rel (%p144) target = $region28
      $region27: #{graphconvolution_forward.2} parent=23 // pred_region
        %s147 = smul.u32 16, %s17
        %p148 = scmp.lt.s32.totalorder %s16, 1
        %s149 = scalar_select %p148, %s16, 1
        %p150 = scmp.lt.s32.totalorder %s147, 15
        %s151 = scalar_select %p150, %s147, 15
        %s152 = smul.addr %s149, 16
        %s153 = sadd.s32 %s151, %s152
        %s154 = smul.addr %s153, 8
        %s155 = scalar_lea.vmem %s0, %s154
        %s156 = smul.u32 16, %s17
      $region28: #{graphconvolution_forward.2} parent=23 // pred_fallthru
        _
    $region24: #{graphconvolution_forward.2} parent=5 // pred_fallthru
      _
    %p157 = scmp.le.s32.totalorder 1, %s9
    %p158 = scmp.lt.s32.totalorder %s9, 3
    %p159 = pnand %p157, %p158
    %p160 = pneg %p159
    // Predicated region
    $region29: #{graphconvolution_forward.2} parent=5 // pred_check
      _
    $region30: #{graphconvolution_forward.2} parent=5 // pred_check_branch
      %162 = sbr.rel (%p159) target = $region32
    $region31: #{graphconvolution_forward.2} parent=5 // pred_region
      %s163 = ssub.s32 %s9, 1
      %s164 = smul.u32 16, %s19
      %p165 = scmp.lt.s32.totalorder %s18, 1
      %s166 = scalar_select %p165, %s18, 1
      %p167 = scmp.lt.s32.totalorder %s164, 15
      %s168 = scalar_select %p167, %s164, 15
      %s169 = smul.addr %s166, 16
      %s170 = sadd.s32 %s168, %s169
      %s171 = smul.addr %s170, 8
      %s172 = scalar_lea.vmem %s0, %s171
      %p173 = pneg %p49
      %p174 = pneg %p46
      %p175 = pneg %p70
      %p176 = pneg %p67
      %p177 = pneg %p91
      %p178 = pneg %p88
      %p179 = pneg %p119
      %p180 = pneg %p116
      %s181 = smul.u32 16, %s19
      %p182 = scmp.lt.s32.totalorder %s18, 1
      %s183 = scalar_select %p182, %s18, 1
      %p184 = scmp.lt.s32.totalorder %s181, 15
      %s185 = scalar_select %p184, %s181, 15
      %s186 = smul.addr %s183, 16
      %s187 = sadd.s32 %s185, %s186
      %s188 = smul.addr %s187, 4
      %s189 = scalar_lea.vmem %s3, %s188
      %s190 = smul.u32 16, %s19
      %p191 = scmp.lt.s32.totalorder %s18, 1
      %s192 = scalar_select %p191, %s18, 1
      %p193 = scmp.lt.s32.totalorder %s190, 15
      %s194 = scalar_select %p193, %s190, 15
      %s195 = smul.addr %s192, 16
      %s196 = sadd.s32 %s194, %s195
      %s197 = smul.addr %s196, 8
      %s198 = scalar_lea.vmem %s0, %s197
      %s199 = smul.u32 16, %s19
      %s200 = smul.u32 16, %s19
      %p201 = scmp.lt.s32.totalorder %s18, 1
      %s202 = scalar_select %p201, %s18, 1
      %p203 = scmp.lt.s32.totalorder %s200, 15
      %s204 = scalar_select %p203, %s200, 15
      %s205 = smul.addr %s202, 16
      %s206 = sadd.s32 %s204, %s205
      %s207 = smul.addr %s206, 4
      %s208 = scalar_lea.vmem %s3, %s207
      %s209 = smul.u32 16, %s19
      %v211 = vld [vmem:[%s198] sm:$0xff]
      %v212 = vld [vmem:[%s198 + $0x8] sm:$0xff]
      %v213 = vld [vmem:[%s198 + $0x10] sm:$0xff]
      %v214 = vld [vmem:[%s198 + $0x18] sm:$0xff]
      %v215 = vld [vmem:[%s198 + $0x20] sm:$0xff]
      %v216 = vld [vmem:[%s198 + $0x28] sm:$0xff]
      %v217 = vld [vmem:[%s198 + $0x30] sm:$0xff]
      %v218 = vld [vmem:[%s198 + $0x38] sm:$0xff]
      %v219 = vld [vmem:[%s198 + $0x40] sm:$0xff]
      %v220 = vld [vmem:[%s198 + $0x48] sm:$0xff]
      %v221 = vld [vmem:[%s198 + $0x50] sm:$0xff]
      %v222 = vld [vmem:[%s198 + $0x58] sm:$0xff]
      %v223 = vld [vmem:[%s198 + $0x60] sm:$0xff]
      %v224 = vld [vmem:[%s198 + $0x68] sm:$0xff]
      %v225 = vld [vmem:[%s198 + $0x70] sm:$0xff]
      %v226 = vld [vmem:[%s198 + $0x78] sm:$0xff]
      %v227 = vpack.c.bf16 %v212, %v211
      %v228 = vpack.c.bf16 %v214, %v213
      %v229 = vpack.c.bf16 %v216, %v215
      %v230 = vpack.c.bf16 %v218, %v217
      %v231 = vpack.c.bf16 %v220, %v219
      %v232 = vpack.c.bf16 %v222, %v221
      %v233 = vpack.c.bf16 %v224, %v223
      %v234 = vpack.c.bf16 %v226, %v225
      %v235 = vld [vmem:[%s1] sm:$0xff]
      %v236 = vld [vmem:[%s1 + $0x8] sm:$0xff]
      %v237 = vld [vmem:[%s1 + $0x10] sm:$0xff]
      %v238 = vld [vmem:[%s1 + $0x18] sm:$0xff]
      %v239 = vld [vmem:[%s1 + $0x20] sm:$0xff]
      %v240 = vld [vmem:[%s1 + $0x28] sm:$0xff]
      %v241 = vld [vmem:[%s1 + $0x30] sm:$0xff]
      %v242 = vld [vmem:[%s1 + $0x38] sm:$0xff]
      %v243 = vld [vmem:[%s1 + $0x40] sm:$0xff]
      %v244 = vld [vmem:[%s1 + $0x48] sm:$0xff]
      %v245 = vld [vmem:[%s1 + $0x50] sm:$0xff]
      %v246 = vld [vmem:[%s1 + $0x58] sm:$0xff]
      %v247 = vld [vmem:[%s1 + $0x60] sm:$0xff]
      %v248 = vld [vmem:[%s1 + $0x68] sm:$0xff]
      %v249 = vld [vmem:[%s1 + $0x70] sm:$0xff]
      %v250 = vld [vmem:[%s1 + $0x78] sm:$0xff]
      %v251 = vpack.c.bf16 %v236, %v235
      %v252 = vpack.c.bf16 %v238, %v237
      %v253 = vpack.c.bf16 %v240, %v239
      %v254 = vpack.c.bf16 %v242, %v241
      %v255 = vpack.c.bf16 %v244, %v243
      %v256 = vpack.c.bf16 %v246, %v245
      %v257 = vpack.c.bf16 %v248, %v247
      %v258 = vpack.c.bf16 %v250, %v249
      %v259 = vld [vmem:[%s2] sm:$0x1]
      %v261 = vlaneseq
      %v262 = vshrl.u32 %v261, 7
      %v263 = vsub.s32 0, %v262
      %v264 = vrot.slane %v259, %v263
      %266 = vmatprep.subr.bf16.mxu0 0
      %267 = vmatpush1.bf16.msra.mxu0 %v258
      %268 = vmatprep.subr.bf16.mxu0 0
      %269 = vmatpush1.bf16.msra.mxu0 %v257
      %270 = vmatprep.subr.bf16.mxu0 0
      %271 = vmatpush1.bf16.msra.mxu0 %v256
      %272 = vmatprep.subr.bf16.mxu0 0
      %273 = vmatpush1.bf16.msra.mxu0 %v255
      %274 = vmatprep.subr.bf16.mxu0 0
      %275 = vmatpush1.bf16.msra.mxu0 %v254
      %276 = vmatprep.subr.bf16.mxu0 0
      %277 = vmatpush1.bf16.msra.mxu0 %v253
      %278 = vmatprep.subr.bf16.mxu0 0
      %279 = vmatpush1.bf16.msra.mxu0 %v252
      %280 = vmatprep.subr.bf16.mxu0 0
      %281 = vmatpush1.bf16.msra.mxu0 %v251
      %282 = vmatprep.subr.bf16.mxu0 0
      %283 = vmatpush2.bf16.msra.mxu0 0
      %284 = vmatprep.subr.bf16.mxu0 0
      %285 = vmatpush2.bf16.msra.mxu0 0
      %286 = vmatprep.subr.bf16.mxu0 0
      %287 = vmatpush2.bf16.msra.mxu0 0
      %288 = vmatprep.subr.bf16.mxu0 0
      %289 = vmatpush2.bf16.msra.mxu0 0
      %290 = vmatprep.subr.bf16.mxu0 0
      %291 = vmatpush2.bf16.msra.mxu0 0
      %292 = vmatprep.subr.bf16.mxu0 0
      %293 = vmatpush2.bf16.msra.mxu0 0
      %294 = vmatprep.subr.bf16.mxu0 0
      %295 = vmatpush2.bf16.msra.mxu0 0
      %296 = vmatprep.subr.bf16.mxu0 0
      %297 = vmatpush2.bf16.msra.mxu0 0
      %298 = vmatprep.mubr.bf16.mxu0 0
      %299 = vmatmul.mubr.bf16.gmra.mxu0 %v227
      %v300 = vpop.f32.mrf.mxu0
      %v301 = vadd.f32 %v264, %v300
      %v302 = vpop.f32.mrf.mxu0
      %v303 = vpop.f32.mrf.mxu0
      %v304 = vadd.f32 %v264, %v303
      %v305 = vpop.f32.mrf.mxu0
      %306 = vmatprep.mubr.bf16.mxu0 0
      %307 = vmatmul.mubr.bf16.gmra.mxu0 %v228
      %v308 = vpop.f32.mrf.mxu0
      %v309 = vadd.f32 %v264, %v308
      %v310 = vpop.f32.mrf.mxu0
      %v311 = vpop.f32.mrf.mxu0
      %v312 = vadd.f32 %v264, %v311
      %v313 = vpop.f32.mrf.mxu0
      %314 = vmatprep.mubr.bf16.mxu0 0
      %315 = vmatmul.mubr.bf16.gmra.mxu0 %v229
      %v316 = vpop.f32.mrf.mxu0
      %v317 = vadd.f32 %v264, %v316
      %v318 = vpop.f32.mrf.mxu0
      %v319 = vpop.f32.mrf.mxu0
      %v320 = vadd.f32 %v264, %v319
      %v321 = vpop.f32.mrf.mxu0
      %322 = vmatprep.mubr.bf16.mxu0 0
      %323 = vmatmul.mubr.bf16.gmra.mxu0 %v230
      %v324 = vpop.f32.mrf.mxu0
      %v325 = vadd.f32 %v264, %v324
      %v326 = vpop.f32.mrf.mxu0
      %v327 = vpop.f32.mrf.mxu0
      %v328 = vadd.f32 %v264, %v327
      %v329 = vpop.f32.mrf.mxu0
      %330 = vmatprep.mubr.bf16.mxu0 0
      %331 = vmatmul.mubr.bf16.gmra.mxu0 %v231
      %v332 = vpop.f32.mrf.mxu0
      %v333 = vadd.f32 %v264, %v332
      %v334 = vpop.f32.mrf.mxu0
      %v335 = vpop.f32.mrf.mxu0
      %v336 = vadd.f32 %v264, %v335
      %v337 = vpop.f32.mrf.mxu0
      %338 = vmatprep.mubr.bf16.mxu0 0
      %339 = vmatmul.mubr.bf16.gmra.mxu0 %v232
      %v340 = vpop.f32.mrf.mxu0
      %v341 = vadd.f32 %v264, %v340
      %v342 = vpop.f32.mrf.mxu0
      %v343 = vpop.f32.mrf.mxu0
      %v344 = vadd.f32 %v264, %v343
      %v345 = vpop.f32.mrf.mxu0
      %346 = vmatprep.mubr.bf16.mxu0 0
      %347 = vmatmul.mubr.bf16.gmra.mxu0 %v233
      %v348 = vpop.f32.mrf.mxu0
      %v349 = vadd.f32 %v264, %v348
      %v350 = vpop.f32.mrf.mxu0
      %v351 = vpop.f32.mrf.mxu0
      %v352 = vadd.f32 %v264, %v351
      %v353 = vpop.f32.mrf.mxu0
      %354 = vmatprep.mubr.bf16.mxu0 0
      %355 = vmatmul.mubr.bf16.gmra.mxu0 %v234
      %v356 = vpop.f32.mrf.mxu0
      %v357 = vadd.f32 %v264, %v356
      %v358 = vpop.f32.mrf.mxu0
      %v359 = vpop.f32.mrf.mxu0
      %v360 = vadd.f32 %v264, %v359
      %v361 = vpop.f32.mrf.mxu0
      %362 = vdwg.mxu0
      %v363 = vmax.f32 %v301, 0.0
      %v364 = vmax.f32 %v304, 0.0
      %v365 = vmax.f32 %v309, 0.0
      %v366 = vmax.f32 %v312, 0.0
      %v367 = vmax.f32 %v317, 0.0
      %v368 = vmax.f32 %v320, 0.0
      %v369 = vmax.f32 %v325, 0.0
      %v370 = vmax.f32 %v328, 0.0
      %v371 = vmax.f32 %v333, 0.0
      %v372 = vmax.f32 %v336, 0.0
      %v373 = vmax.f32 %v341, 0.0
      %v374 = vmax.f32 %v344, 0.0
      %v375 = vmax.f32 %v349, 0.0
      %v376 = vmax.f32 %v352, 0.0
      %v377 = vmax.f32 %v357, 0.0
      %v378 = vmax.f32 %v360, 0.0
      %v379 = vpack.c.bf16 %v364, %v363
      %v380 = vpack.c.bf16 %v366, %v365
      %v381 = vpack.c.bf16 %v368, %v367
      %v382 = vpack.c.bf16 %v370, %v369
      %v383 = vpack.c.bf16 %v372, %v371
      %v384 = vpack.c.bf16 %v374, %v373
      %v385 = vpack.c.bf16 %v376, %v375
      %v386 = vpack.c.bf16 %v378, %v377
      %v395 = vunpack.c.l.b16 %v379
      %v396 = vunpack.c.h.b16 %v379
      %v397 = vunpack.c.l.b16 %v380
      %v398 = vunpack.c.h.b16 %v380
      %v399 = vunpack.c.l.b16 %v381
      %v400 = vunpack.c.h.b16 %v381
      %v401 = vunpack.c.l.b16 %v382
      %v402 = vunpack.c.h.b16 %v382
      %v403 = vunpack.c.l.b16 %v383
      %v404 = vunpack.c.h.b16 %v383
      %v405 = vunpack.c.l.b16 %v384
      %v406 = vunpack.c.h.b16 %v384
      %v407 = vunpack.c.l.b16 %v385
      %v408 = vunpack.c.h.b16 %v385
      %v409 = vunpack.c.l.b16 %v386
      %v410 = vunpack.c.h.b16 %v386
      %v411 = vpack.c.b16 %v395, %v395
      %v412 = vpack.c.b16 %v396, %v396
      %v413 = vpack.c.b16 %v397, %v397
      %v414 = vpack.c.b16 %v398, %v398
      %v415 = vpack.c.b16 %v399, %v399
      %v416 = vpack.c.b16 %v400, %v400
      %v417 = vpack.c.b16 %v401, %v401
      %v418 = vpack.c.b16 %v402, %v402
      %v419 = vpack.c.b16 %v403, %v403
      %v420 = vpack.c.b16 %v404, %v404
      %v421 = vpack.c.b16 %v405, %v405
      %v422 = vpack.c.b16 %v406, %v406
      %v423 = vpack.c.b16 %v407, %v407
      %v424 = vpack.c.b16 %v408, %v408
      %v425 = vpack.c.b16 %v409, %v409
      %v426 = vpack.c.b16 %v410, %v410
      %443 = vst [vmem:[%s208] sm:$0xf] %v411
      %444 = vst [vmem:[%s208 + $0x4] sm:$0xf] %v412
      %445 = vst [vmem:[%s208 + $0x8] sm:$0xf] %v413
      %446 = vst [vmem:[%s208 + $0xc] sm:$0xf] %v414
      %447 = vst [vmem:[%s208 + $0x10] sm:$0xf] %v415
      %448 = vst [vmem:[%s208 + $0x14] sm:$0xf] %v416
      %449 = vst [vmem:[%s208 + $0x18] sm:$0xf] %v417
      %450 = vst [vmem:[%s208 + $0x1c] sm:$0xf] %v418
      %451 = vst [vmem:[%s208 + $0x20] sm:$0xf] %v419
      %452 = vst [vmem:[%s208 + $0x24] sm:$0xf] %v420
      %453 = vst [vmem:[%s208 + $0x28] sm:$0xf] %v421
      %454 = vst [vmem:[%s208 + $0x2c] sm:$0xf] %v422
      %455 = vst [vmem:[%s208 + $0x30] sm:$0xf] %v423
      %456 = vst [vmem:[%s208 + $0x34] sm:$0xf] %v424
      %457 = vst [vmem:[%s208 + $0x38] sm:$0xf] %v425
      %458 = vst [vmem:[%s208 + $0x3c] sm:$0xf] %v426
      %s459 = smul.u32 16, %s19
      %p460 = scmp.lt.s32.totalorder %s18, 1
      %s461 = scalar_select %p460, %s18, 1
      %p462 = scmp.lt.s32.totalorder %s459, 15
      %s463 = scalar_select %p462, %s459, 15
      %s464 = smul.addr %s461, 16
      %s465 = sadd.s32 %s463, %s464
      %s466 = smul.addr %s465, 4
      %s467 = scalar_lea.vmem %s3, %s466
      // Predicated region
      $region33: #{graphconvolution_forward.2} parent=31 // pred_check
        %p468 = pneg %p116
      $region34: #{graphconvolution_forward.2} parent=31 // pred_check_branch
        %470 = sbr.rel (%p468) target = $region36
      $region35: #{graphconvolution_forward.2} parent=31 // pred_region
        %s471 = smul.u32 16, %s19
      $region36: #{graphconvolution_forward.2} parent=31 // pred_fallthru
        _
    $region32: #{graphconvolution_forward.2} parent=5 // pred_fallthru
      _
    %p472 = scmp.le.s32.totalorder 2, %s9
    // Predicated region
    $region37: #{graphconvolution_forward.2} parent=5 // pred_check
      %p473 = pneg %p472
    $region38: #{graphconvolution_forward.2} parent=5 // pred_check_branch
      %475 = sbr.rel (%p473) target = $region40
    $region39: #{graphconvolution_forward.2} parent=5 // pred_region
      %s476 = ssub.s32 %s9, 2
      // Predicated region
      $region41: #{graphconvolution_forward.2} parent=39 // pred_check
        %p477 = pneg %p122
      $region42: #{graphconvolution_forward.2} parent=39 // pred_check_branch
        %479 = sbr.rel (%p477) target = $region44
      $region43: #{graphconvolution_forward.2} parent=39 // pred_region
        %s480 = smul.u32 16, %s21
        %p481 = scmp.lt.s32.totalorder %s20, 1
        %s482 = scalar_select %p481, %s20, 1
        %p483 = scmp.lt.s32.totalorder %s480, 15
        %s484 = scalar_select %p483, %s480, 15
        %s485 = smul.addr %s482, 16
        %s486 = sadd.s32 %s484, %s485
        %s487 = smul.addr %s486, 4
        %s488 = scalar_lea.vmem %s3, %s487
      $region44: #{graphconvolution_forward.2} parent=39 // pred_fallthru
        _
    $region40: #{graphconvolution_forward.2} parent=5 // pred_fallthru
      _
  $region6: #{graphconvolution_forward.2} parent=0 // loop_footer
    %s13 = sadd.s32 1, %s9
  $region7: #{graphconvolution_forward.2} parent=0 // loop_footer_branch
    %8 = sbr.rel target = $region3
  $region8: #{graphconvolution_forward.2} parent=0 // loop_exit
    _

// kernel: graphconvolution_forward.3
$region0: #{graphconvolution_forward.3}
  #allocation0 [shape = 'u32[]', space=smem, size = 0x4, offset = 0x4, fixed_abs, tag = 'smem constant byte address 0x4 - core index']
  #allocation1 [shape = 'u32[144,128]{1,0:T(1,128)}', space=vmem, size = 0x12000, scoped, tag = 'internal scratch']
  #allocation2 [shape = 'f32[128,128]{1,0:T(8,128)}', space=vmem, size = 0x10000, scoped, tag = 'scratch operand']
  %s0 = inlined_call_operand.vmem [shape: f32[2,128,128], index: 0, kind: input, shape index: {}]
  %s1 = inlined_call_operand.vmem [shape: bf16[2,128,128], index: 1, kind: input, shape index: {}]
  %s2 = inlined_call_operand.vmem [shape: f32[2,128,128], index: 2, kind: output, shape index: {}]
  %s3 = sld [smem:[#allocation0]]
  $region49: #{graphconvolution_forward.3} parent=0
    _
  %s5 = ssub.s32 1, %s3
  %s6 = scalar_select 0, %s5, %s3
  loop: start=0, step=1, limit=4
  $region2: #{graphconvolution_forward.3} parent=0 // loop_pre_header
    _
  $region3: #{graphconvolution_forward.3} parent=0 // loop_header
    %s8 = sphi 0, %s12
    %p9 = scmp.ge.s32.totalorder %s8, 4
    %s15 = sphi 0, %s34
    %s16 = sphi 0, %s30
    %s17 = sphi 0, %s26
    %s18 = sphi 0, %s15
    %s19 = sphi 0, %s16
    %s20 = sphi 0, %s17
    %s21 = sphi 0, %s18
    %s22 = sphi 0, %s19
    %s23 = sphi 0, %s20
    %s41 = sphi 0, %s43
    %s44 = sphi 0, %s41
    %s45 = sphi 0, %s44
    %s61 = sphi 0, %s45
    %s69 = sphi 0, %s71
    %s72 = sphi 0, %s69
    %s73 = sphi 0, %s72
    %s89 = sphi 0, %s73
    %s97 = sphi 0, %s99
    %s100 = sphi 0, %s97
    %s101 = sphi 0, %s100
    %s117 = sphi 0, %s101
  $region4: #{graphconvolution_forward.3} parent=0 // loop_header_branch
    %11 = sbr.rel (%p9) target = $region8
  $region5: #{graphconvolution_forward.3} parent=0 // loop_body
    %s13 = ssub.s32 %s8, 1
    %s14 = ssub.s32 %s8, 2
    %s24 = sadd.s32 1, %s17
    %p25 = scmp.ge.s32.totalorder %s24, 1
    %s26 = scalar_select %p25, 0, %s24
    %s27 = sadd.s32 1, %s16
    %s28 = scalar_select %p25, %s27, %s16
    %p29 = scmp.ge.s32.totalorder %s28, 1
    %s30 = scalar_select %p29, 0, %s28
    %s31 = sadd.s32 1, %s15
    %s32 = scalar_select %p29, %s31, %s15
    %p33 = scmp.ge.s32.totalorder %s32, 2
    %s34 = scalar_select %p33, 0, %s32
    %s35 = ssub.s32 %s15, %s34
    %s36 = ssub.s32 %s16, %s30
    %s37 = sor.u32 %s35, %s36
    %s38 = ssub.s32 %s17, %s26
    %s39 = sor.u32 %s37, %s38
    %p40 = scmp.eq.s32.totalorder %s39, 0
    %s42 = sadd.s32 %s41, 1
    %s43 = scalar_select %p40, %s41, %s42
    %p46 = pneg %p40
    %p47 = scmp.eq.s32.totalorder %s8, 1
    %p48 = por %p46, %p47
    %p49 = scmp.ne.s32.totalorder %s41, %s44
    %p50 = scmp.eq.s32.totalorder %s8, 0
    %p51 = por %p49, %p50
    %p52 = scmp.ne.s32.totalorder %s41, %s44
    %p53 = scmp.eq.s32.totalorder %s13, 1
    %p54 = por %p52, %p53
    %p55 = scmp.ne.s32.totalorder %s44, %s45
    %p56 = scmp.eq.s32.totalorder %s13, 0
    %p57 = por %p55, %p56
    %p58 = scmp.ne.s32.totalorder %s44, %s45
    %p59 = scmp.eq.s32.totalorder %s14, 1
    %p60 = por %p58, %p59
    %p62 = scmp.ne.s32.totalorder %s45, %s61
    %p63 = scmp.eq.s32.totalorder %s14, 0
    %p64 = por %p62, %p63
    %s65 = ssub.s32 %s15, %s34
    %s66 = ssub.s32 %s17, %s26
    %s67 = sor.u32 %s65, %s66
    %p68 = scmp.eq.s32.totalorder %s67, 0
    %s70 = sadd.s32 %s69, 1
    %s71 = scalar_select %p68, %s69, %s70
    %p74 = pneg %p68
    %p75 = scmp.eq.s32.totalorder %s8, 1
    %p76 = por %p74, %p75
    %p77 = scmp.ne.s32.totalorder %s69, %s72
    %p78 = scmp.eq.s32.totalorder %s8, 0
    %p79 = por %p77, %p78
    %p80 = scmp.ne.s32.totalorder %s69, %s72
    %p81 = scmp.eq.s32.totalorder %s13, 1
    %p82 = por %p80, %p81
    %p83 = scmp.ne.s32.totalorder %s72, %s73
    %p84 = scmp.eq.s32.totalorder %s13, 0
    %p85 = por %p83, %p84
    %p86 = scmp.ne.s32.totalorder %s72, %s73
    %p87 = scmp.eq.s32.totalorder %s14, 1
    %p88 = por %p86, %p87
    %p90 = scmp.ne.s32.totalorder %s73, %s89
    %p91 = scmp.eq.s32.totalorder %s14, 0
    %p92 = por %p90, %p91
    %s93 = ssub.s32 %s15, %s34
    %s94 = ssub.s32 %s16, %s30
    %s95 = sor.u32 %s93, %s94
    %p96 = scmp.eq.s32.totalorder %s95, 0
    %s98 = sadd.s32 %s97, 1
    %s99 = scalar_select %p96, %s97, %s98
    %p102 = pneg %p96
    %p103 = scmp.eq.s32.totalorder %s8, 1
    %p104 = por %p102, %p103
    %p105 = scmp.ne.s32.totalorder %s97, %s100
    %p106 = scmp.eq.s32.totalorder %s8, 0
    %p107 = por %p105, %p106
    %p108 = scmp.ne.s32.totalorder %s97, %s100
    %p109 = scmp.eq.s32.totalorder %s13, 1
    %p110 = por %p108, %p109
    %p111 = scmp.ne.s32.totalorder %s100, %s101
    %p112 = scmp.eq.s32.totalorder %s13, 0
    %p113 = por %p111, %p112
    %p114 = scmp.ne.s32.totalorder %s100, %s101
    %p115 = scmp.eq.s32.totalorder %s14, 1
    %p116 = por %p114, %p115
    %p118 = scmp.ne.s32.totalorder %s101, %s117
    %p119 = scmp.eq.s32.totalorder %s14, 0
    %p120 = por %p118, %p119
    %p121 = scmp.le.s32.totalorder 1, %s8
    %p122 = scmp.lt.s32.totalorder %s8, 3
    %p123 = pnand %p121, %p122
    %p124 = pneg %p123
    // Predicated region
    $region9: #{graphconvolution_forward.3} parent=5 // pred_check
      _
    $region10: #{graphconvolution_forward.3} parent=5 // pred_check_branch
      %126 = sbr.rel (%p123) target = $region12
    $region11: #{graphconvolution_forward.3} parent=5 // pred_region
      %s127 = ssub.s32 %s8, 1
    $region12: #{graphconvolution_forward.3} parent=5 // pred_fallthru
      _
    %p128 = scmp.lt.s32.totalorder %s8, 2
    // Predicated region
    $region13: #{graphconvolution_forward.3} parent=5 // pred_check
      %p129 = pneg %p128
    $region14: #{graphconvolution_forward.3} parent=5 // pred_check_branch
      %131 = sbr.rel (%p129) target = $region16
    $region15: #{graphconvolution_forward.3} parent=5 // pred_region
      // Predicated region
      $region17: #{graphconvolution_forward.3} parent=15 // pred_check
        %p132 = pneg %p51
      $region18: #{graphconvolution_forward.3} parent=15 // pred_check_branch
        %134 = sbr.rel (%p132) target = $region20
      $region19: #{graphconvolution_forward.3} parent=15 // pred_region
        %s135 = smul.u32 16, %s16
        %p136 = scmp.lt.s32.totalorder %s15, 1
        %s137 = scalar_select %p136, %s15, 1
        %p138 = scmp.lt.s32.totalorder %s135, 15
        %s139 = scalar_select %p138, %s135, 15
        %p140 = scmp.lt.s32.totalorder %s17, 0
        %s141 = scalar_select %p140, %s17, 0
        %s142 = sadd.s32 %s141, %s139
        %s143 = smul.addr %s137, 16
        %s144 = sadd.s32 %s142, %s143
        %s145 = smul.addr %s144, 8
        %s146 = scalar_lea.vmem %s0, %s145
        %s147 = smul.u32 16, %s16
      $region20: #{graphconvolution_forward.3} parent=15 // pred_fallthru
        _
      // Predicated region
      $region21: #{graphconvolution_forward.3} parent=15 // pred_check
        %p148 = pneg %p79
      $region22: #{graphconvolution_forward.3} parent=15 // pred_check_branch
        %150 = sbr.rel (%p148) target = $region24
      $region23: #{graphconvolution_forward.3} parent=15 // pred_region
        %s151 = smul.u32 16, %s17
        %p152 = scmp.lt.s32.totalorder %s15, 1
        %s153 = scalar_select %p152, %s15, 1
        %p154 = scmp.lt.s32.totalorder %s151, 15
        %s155 = scalar_select %p154, %s151, 15
        %s156 = smul.addr %s153, 16
        %s157 = sadd.s32 %s155, %s156
        %s158 = smul.addr %s157, 4
        %s159 = scalar_lea.vmem %s1, %s158
        %s160 = smul.u32 16, %s17
      $region24: #{graphconvolution_forward.3} parent=15 // pred_fallthru
        _
    $region16: #{graphconvolution_forward.3} parent=5 // pred_fallthru
      _
    %p161 = scmp.le.s32.totalorder 1, %s8
    %p162 = scmp.lt.s32.totalorder %s8, 3
    %p163 = pnand %p161, %p162
    %p164 = pneg %p163
    // Predicated region
    $region25: #{graphconvolution_forward.3} parent=5 // pred_check
      _
    $region26: #{graphconvolution_forward.3} parent=5 // pred_check_branch
      %166 = sbr.rel (%p163) target = $region28
    $region27: #{graphconvolution_forward.3} parent=5 // pred_region
      %s167 = ssub.s32 %s8, 1
      %s168 = smul.u32 16, %s19
      %p169 = scmp.lt.s32.totalorder %s18, 1
      %s170 = scalar_select %p169, %s18, 1
      %p171 = scmp.lt.s32.totalorder %s168, 15
      %s172 = scalar_select %p171, %s168, 15
      %p173 = scmp.lt.s32.totalorder %s20, 0
      %s174 = scalar_select %p173, %s20, 0
      %s175 = sadd.s32 %s174, %s172
      %s176 = smul.addr %s170, 16
      %s177 = sadd.s32 %s175, %s176
      %s178 = smul.addr %s177, 8
      %s179 = scalar_lea.vmem %s0, %s178
      %p180 = pneg %p57
      %p181 = pneg %p54
      %s182 = smul.u32 16, %s20
      %p183 = scmp.lt.s32.totalorder %s18, 1
      %s184 = scalar_select %p183, %s18, 1
      %p185 = scmp.lt.s32.totalorder %s182, 15
      %s186 = scalar_select %p185, %s182, 15
      %s187 = smul.addr %s184, 16
      %s188 = sadd.s32 %s186, %s187
      %s189 = smul.addr %s188, 4
      %s190 = scalar_lea.vmem %s1, %s189
      %p191 = pneg %p85
      %p192 = pneg %p82
      %p193 = pneg %p113
      %p194 = pneg %p110
      %s195 = smul.u32 16, %s19
      %p196 = scmp.lt.s32.totalorder %s18, 1
      %s197 = scalar_select %p196, %s18, 1
      %p198 = scmp.lt.s32.totalorder %s195, 15
      %s199 = scalar_select %p198, %s195, 15
      %s200 = smul.addr %s197, 16
      %s201 = sadd.s32 %s199, %s200
      %s202 = smul.addr %s201, 8
      %s203 = scalar_lea.vmem %s2, %s202
      %s204 = smul.u32 16, %s19
      %p205 = scmp.lt.s32.totalorder %s18, 1
      %s206 = scalar_select %p205, %s18, 1
      %p207 = scmp.lt.s32.totalorder %s204, 15
      %s208 = scalar_select %p207, %s204, 15
      %p209 = scmp.lt.s32.totalorder %s20, 0
      %s210 = scalar_select %p209, %s20, 0
      %s211 = sadd.s32 %s210, %s208
      %s212 = smul.addr %s206, 16
      %s213 = sadd.s32 %s211, %s212
      %s214 = smul.addr %s213, 8
      %s215 = scalar_lea.vmem %s0, %s214
      %s216 = smul.u32 16, %s19
      %s217 = smul.u32 16, %s20
      %p218 = scmp.lt.s32.totalorder %s18, 1
      %s219 = scalar_select %p218, %s18, 1
      %p220 = scmp.lt.s32.totalorder %s217, 15
      %s221 = scalar_select %p220, %s217, 15
      %s222 = smul.addr %s219, 16
      %s223 = sadd.s32 %s221, %s222
      %s224 = smul.addr %s223, 4
      %s225 = scalar_lea.vmem %s1, %s224
      %s226 = smul.u32 16, %s20
      %s227 = smul.u32 16, %s19
      %p228 = scmp.lt.s32.totalorder %s18, 1
      %s229 = scalar_select %p228, %s18, 1
      %p230 = scmp.lt.s32.totalorder %s227, 15
      %s231 = scalar_select %p230, %s227, 15
      %s232 = smul.addr %s229, 16
      %s233 = sadd.s32 %s231, %s232
      %s234 = smul.addr %s233, 8
      %s235 = scalar_lea.vmem %s2, %s234
      %s236 = smul.u32 16, %s19
      %p238 = scmp.eq.s32.totalorder %s20, 0
      // Predicated region
      $region29: #{graphconvolution_forward.3} parent=27 // pred_check
        %p239 = pneg %p238
      $region30: #{graphconvolution_forward.3} parent=27 // pred_check_branch
        %241 = sbr.rel (%p239) target = $region32
      $region31: #{graphconvolution_forward.3} parent=27 // pred_region
        %242 = vst [vmem:[#allocation2] sm:$0xff] 0.0
        %243 = vst [vmem:[#allocation2 + $0x8] sm:$0xff] 0.0
        %244 = vst [vmem:[#allocation2 + $0x10] sm:$0xff] 0.0
        %245 = vst [vmem:[#allocation2 + $0x18] sm:$0xff] 0.0
        %246 = vst [vmem:[#allocation2 + $0x20] sm:$0xff] 0.0
        %247 = vst [vmem:[#allocation2 + $0x28] sm:$0xff] 0.0
        %248 = vst [vmem:[#allocation2 + $0x30] sm:$0xff] 0.0
        %249 = vst [vmem:[#allocation2 + $0x38] sm:$0xff] 0.0
        %250 = vst [vmem:[#allocation2 + $0x40] sm:$0xff] 0.0
        %251 = vst [vmem:[#allocation2 + $0x48] sm:$0xff] 0.0
        %252 = vst [vmem:[#allocation2 + $0x50] sm:$0xff] 0.0
        %253 = vst [vmem:[#allocation2 + $0x58] sm:$0xff] 0.0
        %254 = vst [vmem:[#allocation2 + $0x60] sm:$0xff] 0.0
        %255 = vst [vmem:[#allocation2 + $0x68] sm:$0xff] 0.0
        %256 = vst [vmem:[#allocation2 + $0x70] sm:$0xff] 0.0
        %257 = vst [vmem:[#allocation2 + $0x78] sm:$0xff] 0.0
      $region32: #{graphconvolution_forward.3} parent=27 // pred_fallthru
        _
      %v258 = vld [vmem:[#allocation2] sm:$0xff]
      %v259 = vld [vmem:[#allocation2 + $0x8] sm:$0xff]
      %v260 = vld [vmem:[#allocation2 + $0x10] sm:$0xff]
      %v261 = vld [vmem:[#allocation2 + $0x18] sm:$0xff]
      %v262 = vld [vmem:[#allocation2 + $0x20] sm:$0xff]
      %v263 = vld [vmem:[#allocation2 + $0x28] sm:$0xff]
      %v264 = vld [vmem:[#allocation2 + $0x30] sm:$0xff]
      %v265 = vld [vmem:[#allocation2 + $0x38] sm:$0xff]
      %v266 = vld [vmem:[#allocation2 + $0x40] sm:$0xff]
      %v267 = vld [vmem:[#allocation2 + $0x48] sm:$0xff]
      %v268 = vld [vmem:[#allocation2 + $0x50] sm:$0xff]
      %v269 = vld [vmem:[#allocation2 + $0x58] sm:$0xff]
      %v270 = vld [vmem:[#allocation2 + $0x60] sm:$0xff]
      %v271 = vld [vmem:[#allocation2 + $0x68] sm:$0xff]
      %v272 = vld [vmem:[#allocation2 + $0x70] sm:$0xff]
      %v273 = vld [vmem:[#allocation2 + $0x78] sm:$0xff]
      %v274 = vld [vmem:[%s215] sm:$0xff]
      %v275 = vld [vmem:[%s215 + $0x8] sm:$0xff]
      %v276 = vld [vmem:[%s215 + $0x10] sm:$0xff]
      %v277 = vld [vmem:[%s215 + $0x18] sm:$0xff]
      %v278 = vld [vmem:[%s215 + $0x20] sm:$0xff]
      %v279 = vld [vmem:[%s215 + $0x28] sm:$0xff]
      %v280 = vld [vmem:[%s215 + $0x30] sm:$0xff]
      %v281 = vld [vmem:[%s215 + $0x38] sm:$0xff]
      %v282 = vld [vmem:[%s215 + $0x40] sm:$0xff]
      %v283 = vld [vmem:[%s215 + $0x48] sm:$0xff]
      %v284 = vld [vmem:[%s215 + $0x50] sm:$0xff]
      %v285 = vld [vmem:[%s215 + $0x58] sm:$0xff]
      %v286 = vld [vmem:[%s215 + $0x60] sm:$0xff]
      %v287 = vld [vmem:[%s215 + $0x68] sm:$0xff]
      %v288 = vld [vmem:[%s215 + $0x70] sm:$0xff]
      %v289 = vld [vmem:[%s215 + $0x78] sm:$0xff]
      %v290 = vpack.c.bf16 %v275, %v274
      %v291 = vpack.c.bf16 %v277, %v276
      %v292 = vpack.c.bf16 %v279, %v278
      %v293 = vpack.c.bf16 %v281, %v280
      %v294 = vpack.c.bf16 %v283, %v282
      %v295 = vpack.c.bf16 %v285, %v284
      %v296 = vpack.c.bf16 %v287, %v286
      %v297 = vpack.c.bf16 %v289, %v288
      %v298 = vld [vmem:[%s225] sm:$0xf]
      %v299 = vld [vmem:[%s225 + $0x4] sm:$0xf]
      %v300 = vld [vmem:[%s225 + $0x8] sm:$0xf]
      %v301 = vld [vmem:[%s225 + $0xc] sm:$0xf]
      %v302 = vld [vmem:[%s225 + $0x10] sm:$0xf]
      %v303 = vld [vmem:[%s225 + $0x14] sm:$0xf]
      %v304 = vld [vmem:[%s225 + $0x18] sm:$0xf]
      %v305 = vld [vmem:[%s225 + $0x1c] sm:$0xf]
      %v306 = vld [vmem:[%s225 + $0x20] sm:$0xf]
      %v307 = vld [vmem:[%s225 + $0x24] sm:$0xf]
      %v308 = vld [vmem:[%s225 + $0x28] sm:$0xf]
      %v309 = vld [vmem:[%s225 + $0x2c] sm:$0xf]
      %v310 = vld [vmem:[%s225 + $0x30] sm:$0xf]
      %v311 = vld [vmem:[%s225 + $0x34] sm:$0xf]
      %v312 = vld [vmem:[%s225 + $0x38] sm:$0xf]
      %v313 = vld [vmem:[%s225 + $0x3c] sm:$0xf]
      %v330 = vunpack.c.l.b16 %v298
      %v331 = vunpack.c.l.b16 %v299
      %v332 = vunpack.c.l.b16 %v300
      %v333 = vunpack.c.l.b16 %v301
      %v334 = vunpack.c.l.b16 %v302
      %v335 = vunpack.c.l.b16 %v303
      %v336 = vunpack.c.l.b16 %v304
      %v337 = vunpack.c.l.b16 %v305
      %v338 = vunpack.c.l.b16 %v306
      %v339 = vunpack.c.l.b16 %v307
      %v340 = vunpack.c.l.b16 %v308
      %v341 = vunpack.c.l.b16 %v309
      %v342 = vunpack.c.l.b16 %v310
      %v343 = vunpack.c.l.b16 %v311
      %v344 = vunpack.c.l.b16 %v312
      %v345 = vunpack.c.l.b16 %v313
      %v346 = vpack.c.b16 %v331, %v330
      %v347 = vpack.c.b16 %v333, %v332
      %v348 = vpack.c.b16 %v335, %v334
      %v349 = vpack.c.b16 %v337, %v336
      %v350 = vpack.c.b16 %v339, %v338
      %v351 = vpack.c.b16 %v341, %v340
      %v352 = vpack.c.b16 %v343, %v342
      %v353 = vpack.c.b16 %v345, %v344
      %362 = vmatprep.subr.bf16.mxu0 0
      %363 = vmatpush1.bf16.msra.mxu0 %v353
      %364 = vmatprep.subr.bf16.mxu0 0
      %365 = vmatpush1.bf16.msra.mxu0 %v352
      %366 = vmatprep.subr.bf16.mxu0 0
      %367 = vmatpush1.bf16.msra.mxu0 %v351
      %368 = vmatprep.subr.bf16.mxu0 0
      %369 = vmatpush1.bf16.msra.mxu0 %v350
      %370 = vmatprep.subr.bf16.mxu0 0
      %371 = vmatpush1.bf16.msra.mxu0 %v349
      %372 = vmatprep.subr.bf16.mxu0 0
      %373 = vmatpush1.bf16.msra.mxu0 %v348
      %374 = vmatprep.subr.bf16.mxu0 0
      %375 = vmatpush1.bf16.msra.mxu0 %v347
      %376 = vmatprep.subr.bf16.mxu0 0
      %377 = vmatpush1.bf16.msra.mxu0 %v346
      %378 = vmatprep.subr.bf16.mxu0 0
      %379 = vmatpush2.bf16.msra.mxu0 0
      %380 = vmatprep.subr.bf16.mxu0 0
      %381 = vmatpush2.bf16.msra.mxu0 0
      %382 = vmatprep.subr.bf16.mxu0 0
      %383 = vmatpush2.bf16.msra.mxu0 0
      %384 = vmatprep.subr.bf16.mxu0 0
      %385 = vmatpush2.bf16.msra.mxu0 0
      %386 = vmatprep.subr.bf16.mxu0 0
      %387 = vmatpush2.bf16.msra.mxu0 0
      %388 = vmatprep.subr.bf16.mxu0 0
      %389 = vmatpush2.bf16.msra.mxu0 0
      %390 = vmatprep.subr.bf16.mxu0 0
      %391 = vmatpush2.bf16.msra.mxu0 0
      %392 = vmatprep.subr.bf16.mxu0 0
      %393 = vmatpush2.bf16.msra.mxu0 0
      %394 = vmatprep.mubr.bf16.mxu0 0
      %395 = vmatmul.mubr.bf16.gmra.mxu0 %v290
      %v396 = vpop.f32.mrf.mxu0
      %v397 = vadd.f32 0.0, %v396
      %v398 = vpop.f32.mrf.mxu0
      %v399 = vpop.f32.mrf.mxu0
      %v400 = vadd.f32 0.0, %v399
      %v401 = vpop.f32.mrf.mxu0
      %402 = vmatprep.mubr.bf16.mxu0 0
      %403 = vmatmul.mubr.bf16.gmra.mxu0 %v291
      %v404 = vpop.f32.mrf.mxu0
      %v405 = vadd.f32 0.0, %v404
      %v406 = vpop.f32.mrf.mxu0
      %v407 = vpop.f32.mrf.mxu0
      %v408 = vadd.f32 0.0, %v407
      %v409 = vpop.f32.mrf.mxu0
      %410 = vmatprep.mubr.bf16.mxu0 0
      %411 = vmatmul.mubr.bf16.gmra.mxu0 %v292
      %v412 = vpop.f32.mrf.mxu0
      %v413 = vadd.f32 0.0, %v412
      %v414 = vpop.f32.mrf.mxu0
      %v415 = vpop.f32.mrf.mxu0
      %v416 = vadd.f32 0.0, %v415
      %v417 = vpop.f32.mrf.mxu0
      %418 = vmatprep.mubr.bf16.mxu0 0
      %419 = vmatmul.mubr.bf16.gmra.mxu0 %v293
      %v420 = vpop.f32.mrf.mxu0
      %v421 = vadd.f32 0.0, %v420
      %v422 = vpop.f32.mrf.mxu0
      %v423 = vpop.f32.mrf.mxu0
      %v424 = vadd.f32 0.0, %v423
      %v425 = vpop.f32.mrf.mxu0
      %426 = vmatprep.mubr.bf16.mxu0 0
      %427 = vmatmul.mubr.bf16.gmra.mxu0 %v294
      %v428 = vpop.f32.mrf.mxu0
      %v429 = vadd.f32 0.0, %v428
      %v430 = vpop.f32.mrf.mxu0
      %v431 = vpop.f32.mrf.mxu0
      %v432 = vadd.f32 0.0, %v431
      %v433 = vpop.f32.mrf.mxu0
      %434 = vmatprep.mubr.bf16.mxu0 0
      %435 = vmatmul.mubr.bf16.gmra.mxu0 %v295
      %v436 = vpop.f32.mrf.mxu0
      %v437 = vadd.f32 0.0, %v436
      %v438 = vpop.f32.mrf.mxu0
      %v439 = vpop.f32.mrf.mxu0
      %v440 = vadd.f32 0.0, %v439
      %v441 = vpop.f32.mrf.mxu0
      %442 = vmatprep.mubr.bf16.mxu0 0
      %443 = vmatmul.mubr.bf16.gmra.mxu0 %v296
      %v444 = vpop.f32.mrf.mxu0
      %v445 = vadd.f32 0.0, %v444
      %v446 = vpop.f32.mrf.mxu0
      %v447 = vpop.f32.mrf.mxu0
      %v448 = vadd.f32 0.0, %v447
      %v449 = vpop.f32.mrf.mxu0
      %450 = vmatprep.mubr.bf16.mxu0 0
      %451 = vmatmul.mubr.bf16.gmra.mxu0 %v297
      %v452 = vpop.f32.mrf.mxu0
      %v453 = vadd.f32 0.0, %v452
      %v454 = vpop.f32.mrf.mxu0
      %v455 = vpop.f32.mrf.mxu0
      %v456 = vadd.f32 0.0, %v455
      %v457 = vpop.f32.mrf.mxu0
      %458 = vdwg.mxu0
      %v459 = vadd.f32 %v258, %v397
      %v460 = vadd.f32 %v259, %v400
      %v461 = vadd.f32 %v260, %v405
      %v462 = vadd.f32 %v261, %v408
      %v463 = vadd.f32 %v262, %v413
      %v464 = vadd.f32 %v263, %v416
      %v465 = vadd.f32 %v264, %v421
      %v466 = vadd.f32 %v265, %v424
      %v467 = vadd.f32 %v266, %v429
      %v468 = vadd.f32 %v267, %v432
      %v469 = vadd.f32 %v268, %v437
      %v470 = vadd.f32 %v269, %v440
      %v471 = vadd.f32 %v270, %v445
      %v472 = vadd.f32 %v271, %v448
      %v473 = vadd.f32 %v272, %v453
      %v474 = vadd.f32 %v273, %v456
      %475 = vst [vmem:[#allocation2] sm:$0xff] %v459
      %476 = vst [vmem:[#allocation2 + $0x8] sm:$0xff] %v460
      %477 = vst [vmem:[#allocation2 + $0x10] sm:$0xff] %v461
      %478 = vst [vmem:[#allocation2 + $0x18] sm:$0xff] %v462
      %479 = vst [vmem:[#allocation2 + $0x20] sm:$0xff] %v463
      %480 = vst [vmem:[#allocation2 + $0x28] sm:$0xff] %v464
      %481 = vst [vmem:[#allocation2 + $0x30] sm:$0xff] %v465
      %482 = vst [vmem:[#allocation2 + $0x38] sm:$0xff] %v466
      %483 = vst [vmem:[#allocation2 + $0x40] sm:$0xff] %v467
      %484 = vst [vmem:[#allocation2 + $0x48] sm:$0xff] %v468
      %485 = vst [vmem:[#allocation2 + $0x50] sm:$0xff] %v469
      %486 = vst [vmem:[#allocation2 + $0x58] sm:$0xff] %v470
      %487 = vst [vmem:[#allocation2 + $0x60] sm:$0xff] %v471
      %488 = vst [vmem:[#allocation2 + $0x68] sm:$0xff] %v472
      %489 = vst [vmem:[#allocation2 + $0x70] sm:$0xff] %v473
      %490 = vst [vmem:[#allocation2 + $0x78] sm:$0xff] %v474
      // Predicated region
      $region33: #{graphconvolution_forward.3} parent=27 // pred_check
        %p491 = pneg %p238
      $region34: #{graphconvolution_forward.3} parent=27 // pred_check_branch
        %493 = sbr.rel (%p491) target = $region36
      $region35: #{graphconvolution_forward.3} parent=27 // pred_region
        %v494 = vld [vmem:[#allocation2] sm:$0xff]
        %v495 = vld [vmem:[#allocation2 + $0x8] sm:$0xff]
        %v496 = vld [vmem:[#allocation2 + $0x10] sm:$0xff]
        %v497 = vld [vmem:[#allocation2 + $0x18] sm:$0xff]
        %v498 = vld [vmem:[#allocation2 + $0x20] sm:$0xff]
        %v499 = vld [vmem:[#allocation2 + $0x28] sm:$0xff]
        %v500 = vld [vmem:[#allocation2 + $0x30] sm:$0xff]
        %v501 = vld [vmem:[#allocation2 + $0x38] sm:$0xff]
        %v502 = vld [vmem:[#allocation2 + $0x40] sm:$0xff]
        %v503 = vld [vmem:[#allocation2 + $0x48] sm:$0xff]
        %v504 = vld [vmem:[#allocation2 + $0x50] sm:$0xff]
        %v505 = vld [vmem:[#allocation2 + $0x58] sm:$0xff]
        %v506 = vld [vmem:[#allocation2 + $0x60] sm:$0xff]
        %v507 = vld [vmem:[#allocation2 + $0x68] sm:$0xff]
        %v508 = vld [vmem:[#allocation2 + $0x70] sm:$0xff]
        %v509 = vld [vmem:[#allocation2 + $0x78] sm:$0xff]
        %510 = vst [vmem:[%s235] sm:$0xff] %v494
        %511 = vst [vmem:[%s235 + $0x8] sm:$0xff] %v495
        %512 = vst [vmem:[%s235 + $0x10] sm:$0xff] %v496
        %513 = vst [vmem:[%s235 + $0x18] sm:$0xff] %v497
        %514 = vst [vmem:[%s235 + $0x20] sm:$0xff] %v498
        %515 = vst [vmem:[%s235 + $0x28] sm:$0xff] %v499
        %516 = vst [vmem:[%s235 + $0x30] sm:$0xff] %v500
        %517 = vst [vmem:[%s235 + $0x38] sm:$0xff] %v501
        %518 = vst [vmem:[%s235 + $0x40] sm:$0xff] %v502
        %519 = vst [vmem:[%s235 + $0x48] sm:$0xff] %v503
        %520 = vst [vmem:[%s235 + $0x50] sm:$0xff] %v504
        %521 = vst [vmem:[%s235 + $0x58] sm:$0xff] %v505
        %522 = vst [vmem:[%s235 + $0x60] sm:$0xff] %v506
        %523 = vst [vmem:[%s235 + $0x68] sm:$0xff] %v507
        %524 = vst [vmem:[%s235 + $0x70] sm:$0xff] %v508
        %525 = vst [vmem:[%s235 + $0x78] sm:$0xff] %v509
      $region36: #{graphconvolution_forward.3} parent=27 // pred_fallthru
        _
      %s526 = smul.u32 16, %s19
      %p527 = scmp.lt.s32.totalorder %s18, 1
      %s528 = scalar_select %p527, %s18, 1
      %p529 = scmp.lt.s32.totalorder %s526, 15
      %s530 = scalar_select %p529, %s526, 15
      %s531 = smul.addr %s528, 16
      %s532 = sadd.s32 %s530, %s531
      %s533 = smul.addr %s532, 8
      %s534 = scalar_lea.vmem %s2, %s533
      // Predicated region
      $region37: #{graphconvolution_forward.3} parent=27 // pred_check
        %p535 = pneg %p110
      $region38: #{graphconvolution_forward.3} parent=27 // pred_check_branch
        %537 = sbr.rel (%p535) target = $region40
      $region39: #{graphconvolution_forward.3} parent=27 // pred_region
        %s538 = smul.u32 16, %s19
      $region40: #{graphconvolution_forward.3} parent=27 // pred_fallthru
        _
    $region28: #{graphconvolution_forward.3} parent=5 // pred_fallthru
      _
    %p539 = scmp.le.s32.totalorder 2, %s8
    // Predicated region
    $region41: #{graphconvolution_forward.3} parent=5 // pred_check
      %p540 = pneg %p539
    $region42: #{graphconvolution_forward.3} parent=5 // pred_check_branch
      %542 = sbr.rel (%p540) target = $region44
    $region43: #{graphconvolution_forward.3} parent=5 // pred_region
      %s543 = ssub.s32 %s8, 2
      // Predicated region
      $region45: #{graphconvolution_forward.3} parent=43 // pred_check
        %p544 = pneg %p116
      $region46: #{graphconvolution_forward.3} parent=43 // pred_check_branch
        %546 = sbr.rel (%p544) target = $region48
      $region47: #{graphconvolution_forward.3} parent=43 // pred_region
        %s547 = smul.u32 16, %s22
        %p548 = scmp.lt.s32.totalorder %s21, 1
        %s549 = scalar_select %p548, %s21, 1
        %p550 = scmp.lt.s32.totalorder %s547, 15
        %s551 = scalar_select %p550, %s547, 15
        %s552 = smul.addr %s549, 16
        %s553 = sadd.s32 %s551, %s552
        %s554 = smul.addr %s553, 8
        %s555 = scalar_lea.vmem %s2, %s554
      $region48: #{graphconvolution_forward.3} parent=43 // pred_fallthru
        _
    $region44: #{graphconvolution_forward.3} parent=5 // pred_fallthru
      _
  $region6: #{graphconvolution_forward.3} parent=0 // loop_footer
    %s12 = sadd.s32 1, %s8
  $region7: #{graphconvolution_forward.3} parent=0 // loop_footer_branch
    %7 = sbr.rel target = $region3
  $region8: #{graphconvolution_forward.3} parent=0 // loop_exit
    _

</llo_original>
